<compile_context>
chip_gen: v7x
topology: tpu7x:2x2x1
jax: 0.10.0
libtpu: 0.0.40
codegen_flags: <defaults>
</compile_context>

<pallas_src>
import math
from functools import partial

import jax
import jax.numpy as jnp
from jax import lax
from jax.experimental import pallas as pl
from jax.experimental.pallas import tpu as pltpu


def _round_up(n, m):
    return ((n + m - 1) // m) * m


_CHIP_DEFAULTS = None


def _chip_defaults():
    """(vmem_limit_bytes, linear_row_tile, q_tile, kv_tile) tuned to VMEM size."""
    global _CHIP_DEFAULTS
    if _CHIP_DEFAULTS is None:
        try:
            cap = int(pltpu.get_tpu_info().vmem_capacity_bytes)
        except Exception:
            cap = 64 * 1024 * 1024               # conservative (v7x-sized) fallback
        limit = int(cap * 0.8)                   # headroom for Mosaic scratch / sems
        if cap >= 100 * 1024 * 1024:             # v5e / v6e: 128 MiB per core
            _CHIP_DEFAULTS = (limit, 512, 256, 1024)
        else:                                    # v7x: 64 MiB per core / unknown
            _CHIP_DEFAULTS = (limit, 256, 128, 512)
    return _CHIP_DEFAULTS


# --------------------------------------------------------------------------
# Fused row-tiled linear:  out_t = x @ W_t + b_t   for t in 0..n_out-1
# (weights concatenated along the output dim; out_{scale_index} gets * scale).
# Used for fused QKV / fused KV / single projections and the final linear.
# --------------------------------------------------------------------------
def _proj_kernel(x_ref, w_ref, b_ref, *out_refs, d_out, scale_index, scale):
    x = x_ref[...]                                             # (tm, d_in), model dtype
    acc = jnp.dot(x, w_ref[...], preferred_element_type=jnp.float32)
    acc = acc + b_ref[...].astype(jnp.float32)                 # (tm, n_out*d_out) f32
    for t, o_ref in enumerate(out_refs):
        blk = acc[:, t * d_out:(t + 1) * d_out]
        if t == scale_index:
            blk = blk * jnp.float32(scale)                     # fold 1/sqrt(dh) into Q
        o_ref[...] = blk.astype(o_ref.dtype)                   # lane-dense (tm, d_out)


def _fused_linear(x2d, ws, bs, *, scale_index=-1, scale=1.0, tm, vmem_limit):
    n, d_in = x2d.shape
    d_out = ws[0].shape[1]
    n_out = len(ws)
    w_cat = ws[0] if n_out == 1 else jnp.concatenate(ws, axis=1)
    b_cat = (bs[0] if n_out == 1 else jnp.concatenate(bs, axis=0)).reshape(1, n_out * d_out)

    tm = min(tm, _round_up(n, 16))
    if _round_up(n, tm) == tm and tm >= 32:
        # Split a single-tile grid in two so both v7x TensorCores get work.
        tm = _round_up(tm // 2, 16)
    n_pad = _round_up(n, tm)
    if n_pad != n:
        x2d = jnp.pad(x2d, ((0, n_pad - n), (0, 0)))

    # TODO(synk): mark the grid-invariant W/b specs pipeline_mode=pl.Buffered(1)
    # (and tile d_out for very large model_dim) once verified on the toolchain.
    outs = pl.pallas_call(
        partial(_proj_kernel, d_out=d_out, scale_index=scale_index, scale=scale),
        out_shape=tuple(jax.ShapeDtypeStruct((n_pad, d_out), x2d.dtype)
                        for _ in range(n_out)),
        grid_spec=pltpu.PrefetchScalarGridSpec(
            num_scalar_prefetch=0,
            grid=(n_pad // tm,),
            in_specs=[
                pl.BlockSpec((tm, d_in), lambda i: (i, 0)),             # x row tile
                pl.BlockSpec((d_in, n_out * d_out), lambda i: (0, 0)),  # W (resident)
                pl.BlockSpec((1, n_out * d_out), lambda i: (0, 0)),     # b (resident)
            ],
            out_specs=tuple(pl.BlockSpec((tm, d_out), lambda i: (i, 0))
                            for _ in range(n_out)),
        ),
        compiler_params=pltpu.CompilerParams(
            dimension_semantics=("parallel",),
            vmem_limit_bytes=vmem_limit,
        ),
    )(x2d, w_cat, b_cat)
    if not isinstance(outs, (tuple, list)):
        outs = (outs,)
    return [o[:n] if n_pad != n else o for o in outs]


# --------------------------------------------------------------------------
# Attention core: grid (B, q-tile, kv-tile) online softmax, heads looped
# in-kernel on dh-wide lane slices of the (tq, D) / (tkv, D) tiles.
# --------------------------------------------------------------------------
def _attn_kernel(*refs, head_count, dh, s_kv, tkv, has_mask, kv_padded):
    if has_mask:
        q_ref, k_ref, v_ref, mask_ref, o_ref, m_ref, l_ref, acc_ref = refs
    else:
        q_ref, k_ref, v_ref, o_ref, m_ref, l_ref, acc_ref = refs

    j = pl.program_id(2)

    @pl.when(j == 0)
    def _():
        m_ref[...] = jnp.full(m_ref.shape, -jnp.inf, jnp.float32)
        l_ref[...] = jnp.zeros(l_ref.shape, jnp.float32)
        acc_ref[...] = jnp.zeros(acc_ref.shape, jnp.float32)

    q = q_ref[...]                                 # (tq, D)  (Q scale pre-folded)
    k = k_ref[...]                                 # (tkv, D)
    v = v_ref[...]                                 # (tkv, D)

    masked = None
    if has_mask:
        masked = mask_ref[...] != 0                # (tq, tkv) or (1, tkv) bool

    pad_cols = None
    if kv_padded:
        col = lax.broadcasted_iota(jnp.int32, (1, tkv), 1) + j * tkv
        pad_cols = col >= s_kv                     # padded keys, zero extra DMA

    for h in range(head_count):                    # static unroll over heads
        lo = h * dh
        qh = q[:, lo:lo + dh]
        kh = k[:, lo:lo + dh]
        vh = v[:, lo:lo + dh]
        s = lax.dot_general(qh, kh, (((1,), (1,)), ((), ())),
                            preferred_element_type=jnp.float32)     # (tq, tkv) f32
        if has_mask:
            s = jnp.where(masked, jnp.float32(-1e18), s)            # masked_fill semantics
        if kv_padded:
            s = jnp.where(pad_cols, -jnp.inf, s)                    # drop padded keys
        m_prev = m_ref[h]                                           # (tq, 1)
        m_new = jnp.maximum(m_prev, jnp.max(s, axis=-1, keepdims=True))
        alpha = jnp.exp(m_prev - m_new)
        p = jnp.exp(s - m_new)
        l_ref[h] = alpha * l_ref[h] + jnp.sum(p, axis=-1, keepdims=True)
        pv = jnp.dot(p.astype(vh.dtype), vh, preferred_element_type=jnp.float32)
        acc_ref[h] = alpha * acc_ref[h] + pv
        m_ref[h] = m_new

    @pl.when(j == pl.num_programs(2) - 1)
    def _():
        inv = pl.reciprocal(l_ref[...], approx=True)                # (H, tq, 1), EUP
        cols = [acc_ref[h] * inv[h] for h in range(head_count)]
        # single lane-dense (tq, D) store, already in (B, S_q, D) layout
        o_ref[...] = jnp.concatenate(cols, axis=-1).astype(o_ref.dtype)


def _attention(q, k, v, mask_i8, *, head_count, tq, tkv, vmem_limit):
    """q: (B, S_q, D), k/v: (B, S_kv, D), mask_i8: None | (B, 1|S_q, S_kv) int8."""
    b, s_q, d = q.shape
    s_kv = k.shape[1]
    dh = d // head_count

    tq = min(tq, _round_up(s_q, 32))
    tkv = min(tkv, _round_up(s_kv, 128))
    s_q_pad = _round_up(s_q, tq)
    s_kv_pad = _round_up(s_kv, tkv)
    kv_padded = s_kv_pad != s_kv

    if s_q_pad != s_q:
        q = jnp.pad(q, ((0, 0), (0, s_q_pad - s_q), (0, 0)))
    if kv_padded:
        k = jnp.pad(k, ((0, 0), (0, s_kv_pad - s_kv), (0, 0)))
        v = jnp.pad(v, ((0, 0), (0, s_kv_pad - s_kv), (0, 0)))

    has_mask = mask_i8 is not None
    in_specs = [
        pl.BlockSpec((None, tq, d), lambda bb, i, j: (bb, i, 0)),
        pl.BlockSpec((None, tkv, d), lambda bb, i, j: (bb, j, 0)),
        pl.BlockSpec((None, tkv, d), lambda bb, i, j: (bb, j, 0)),
    ]
    operands = [q, k, v]
    if has_mask:
        bcast_rows = mask_i8.shape[1] == 1
        pad_rows = 0 if bcast_rows else s_q_pad - s_q
        if pad_rows or kv_padded:
            mask_i8 = jnp.pad(mask_i8, ((0, 0), (0, pad_rows), (0, s_kv_pad - s_kv)))
        if bcast_rows:   # keep the broadcast dim compact: (B, 1, S_kv) stays 1 row
            in_specs.append(pl.BlockSpec((None, 1, tkv), lambda bb, i, j: (bb, 0, j)))
        else:
            in_specs.append(pl.BlockSpec((None, tq, tkv), lambda bb, i, j: (bb, i, j)))
        operands.append(mask_i8)

    kernel = partial(_attn_kernel, head_count=head_count, dh=dh, s_kv=s_kv,
                     tkv=tkv, has_mask=has_mask, kv_padded=kv_padded)

    out = pl.pallas_call(
        kernel,
        out_shape=jax.ShapeDtypeStruct((b, s_q_pad, d), q.dtype),
        grid_spec=pltpu.PrefetchScalarGridSpec(
            num_scalar_prefetch=0,
            grid=(b, s_q_pad // tq, s_kv_pad // tkv),
            in_specs=in_specs,
            out_specs=pl.BlockSpec((None, tq, d), lambda bb, i, j: (bb, i, 0)),
            scratch_shapes=[
                pltpu.VMEM((head_count, tq, 1), jnp.float32),    # running max m
                pltpu.VMEM((head_count, tq, 1), jnp.float32),    # running denom l
                pltpu.VMEM((head_count, tq, dh), jnp.float32),   # context accumulator
            ],
        ),
        compiler_params=pltpu.CompilerParams(
            dimension_semantics=("parallel", "parallel", "arbitrary"),
            vmem_limit_bytes=vmem_limit,
        ),
    )(*operands)
    return out[:, :s_q] if s_q_pad != s_q else out


# --------------------------------------------------------------------------
# Full MultiHeadedAttention forward (weights in (in, out) layout).
# --------------------------------------------------------------------------
def multi_headed_attention(key, value, query, *, wq, bq, wk, bk, wv, bv,
                           wo=None, bo=None, head_count, mask=None,
                           use_final_linear=True,
                           tile_rows=None, tile_q=None, tile_kv=None):
    vmem_limit, tm_d, tq_d, tkv_d = _chip_defaults()
    tm = tile_rows or tm_d
    tq = tile_q or tq_d
    tkv = tile_kv or tkv_d

    b, s_q, d = query.shape
    s_kv = key.shape[1]
    h = head_count
    assert d % h == 0
    dh = d // h
    scale = 1.0 / math.sqrt(dh)

    # ---- fused Q/K/V projections (activation streamed once per distinct input) ----
    q2d = query.reshape(b * s_q, d)
    if (query is key) and (key is value):            # self-attention: one (D, 3D) pass
        q_p, k_p, v_p = _fused_linear(q2d, [wq, wk, wv], [bq, bk, bv],
                                      scale_index=0, scale=scale,
                                      tm=tm, vmem_limit=vmem_limit)
    else:
        if key is value:                             # shared K/V input: one (D, 2D) pass
            k_p, v_p = _fused_linear(key.reshape(b * s_kv, d), [wk, wv], [bk, bv],
                                     tm=tm, vmem_limit=vmem_limit)
        else:
            (k_p,) = _fused_linear(key.reshape(b * s_kv, d), [wk], [bk],
                                   tm=tm, vmem_limit=vmem_limit)
            (v_p,) = _fused_linear(value.reshape(b * s_kv, d), [wv], [bv],
                                   tm=tm, vmem_limit=vmem_limit)
        (q_p,) = _fused_linear(q2d, [wq], [bq], scale_index=0, scale=scale,
                               tm=tm, vmem_limit=vmem_limit)

    # Lane-dense (B, S, D) goes straight into the attention kernel; per-head
    # dh-wide slices are taken in-kernel -> no XLA head transposes anywhere.
    q3 = q_p.reshape(b, s_q, d)
    k3 = k_p.reshape(b, s_kv, d)
    v3 = v_p.reshape(b, s_kv, d)

    mask_i8 = None
    if mask is not None:
        m3 = jnp.asarray(mask)
        if m3.ndim == 2:                             # (B, S_kv) key-padding mask
            m3 = m3[:, None, :]
        assert m3.shape[0] == b and m3.shape[2] == s_kv and m3.shape[1] in (1, s_q)
        mask_i8 = (m3 != 0).astype(jnp.int8)         # compact, broadcast dims preserved

    # TODO(synk): attention-prob dropout (p=0.1) is training-only; identity at inference.
    # Note: the reference module's self.LayerNorm is never used in forward(); omitted.
    ctx = _attention(q3, k3, v3, mask_i8, head_count=h, tq=tq, tkv=tkv,
                     vmem_limit=vmem_limit)          # (B, S_q, D)

    if not use_final_linear:
        return ctx.reshape(b, s_q, h, dh).transpose(0, 2, 1, 3)   # (B, H, S_q, dh)

    (out,) = _fused_linear(ctx.reshape(b * s_q, d), [wo], [bo],
                           tm=tm, vmem_limit=vmem_limit)
    return out.reshape(b, s_q, d)


# --------------------------------------------------------------------------
# Pure-JAX reference (f32) mirroring the PyTorch forward.
# --------------------------------------------------------------------------
def _reference(key, value, query, wq, bq, wk, bk, wv, bv, wo, bo, head_count,
               mask=None):
    f = lambda t: t.astype(jnp.float32)
    b, s_q, d = query.shape
    h = head_count
    dh = d // h

    def shape_heads(x):
        return x.reshape(b, -1, h, dh).transpose(0, 2, 1, 3)

    k = shape_heads(f(key) @ f(wk) + f(bk))
    v = shape_heads(f(value) @ f(wv) + f(bv))
    q = shape_heads(f(query) @ f(wq) + f(bq)) / math.sqrt(dh)
    scores = jnp.einsum("bhqd,bhkd->bhqk", q, k)
    if mask is not None:
        m = jnp.asarray(mask)
        if m.ndim == 2:
            m = m[:, None, :]
        scores = jnp.where(m[:, None, :, :] != 0, jnp.float32(-1e18), scores)
    attn = jax.nn.softmax(scores, axis=-1)
    ctx = jnp.einsum("bhqk,bhkd->bhqd", attn, v)
    ctx = ctx.transpose(0, 2, 1, 3).reshape(b, s_q, d)
    return ctx @ f(wo) + f(bo)


if __name__ == "__main__":
    B, S_Q, S_KV, D, H = 2, 8, 16, 32, 4

    root = jax.random.PRNGKey(0)
    (kk, kval, kq, kwq, kbq, kwk, kbk, kwv, kbv, kwo, kbo,
     kmask, kbm, kx) = jax.random.split(root, 14)

    key_in = jax.random.normal(kk, (B, S_KV, D), jnp.float32)
    value_in = jax.random.normal(kval, (B, S_KV, D), jnp.float32)
    query_in = jax.random.normal(kq, (B, S_Q, D), jnp.float32)

    mkw = lambda k, shp, s: jax.random.normal(k, shp, jnp.float32) * s
    wq, bq = mkw(kwq, (D, D), 0.05), mkw(kbq, (D,), 0.01)
    wk, bk = mkw(kwk, (D, D), 0.05), mkw(kbk, (D,), 0.01)
    wv, bv = mkw(kwv, (D, D), 0.05), mkw(kbv, (D,), 0.01)
    wo, bo = mkw(kwo, (D, D), 0.05), mkw(kbo, (D,), 0.01)
    params = dict(wq=wq, bq=bq, wk=wk, bk=bk, wv=wv, bv=bv, wo=wo, bo=bo, head_count=H)

    mask_full = jax.random.bernoulli(kmask, 0.3, (B, S_Q, S_KV))
    mask_bcast = jax.random.bernoulli(kbm, 0.3, (B, 1, S_KV))

    # ---- f32 cross-attention, no mask ----
    out = jax.block_until_ready(multi_headed_attention(key_in, value_in, query_in, **params))
    ref = _reference(key_in, value_in, query_in, wq, bq, wk, bk, wv, bv, wo, bo, H)
    assert out.shape == (B, S_Q, D) and out.dtype == query_in.dtype
    assert jnp.allclose(out, ref, atol=5e-3, rtol=5e-3), "f32 mismatch (no mask)"

    # ---- f32 cross-attention, full (B, S_q, S_kv) mask ----
    out_m = jax.block_until_ready(
        multi_headed_attention(key_in, value_in, query_in, mask=mask_full, **params))
    ref_m = _reference(key_in, value_in, query_in, wq, bq, wk, bk, wv, bv, wo, bo, H,
                       mask=mask_full)
    assert jnp.allclose(out_m, ref_m, atol=5e-3, rtol=5e-3), "f32 mismatch (full mask)"

    # ---- f32 self-attention (fused QKV pass) with broadcast (B, 1, S_kv) mask ----
    x_self = jax.random.normal(kx, (B, S_KV, D), jnp.float32)
    out_s = jax.block_until_ready(
        multi_headed_attention(x_self, x_self, x_self, mask=mask_bcast, **params))
    ref_s = _reference(x_self, x_self, x_self, wq, bq, wk, bk, wv, bv, wo, bo, H,
                       mask=mask_bcast)
    assert jnp.allclose(out_s, ref_s, atol=5e-3, rtol=5e-3), "f32 mismatch (self-attn)"

    # ---- multi kv-tile online softmax + ragged padding (forces 3 kv tiles) ----
    B2, SQ2, SK2, D2, H2 = 1, 40, 300, 64, 4
    k2 = jax.random.split(jax.random.PRNGKey(1), 12)
    key2 = jax.random.normal(k2[0], (B2, SK2, D2), jnp.float32)
    val2 = jax.random.normal(k2[1], (B2, SK2, D2), jnp.float32)
    qry2 = jax.random.normal(k2[2], (B2, SQ2, D2), jnp.float32)
    wq2, bq2 = mkw(k2[3], (D2, D2), 0.05), mkw(k2[4], (D2,), 0.01)
    wk2, bk2 = mkw(k2[5], (D2, D2), 0.05), mkw(k2[6], (D2,), 0.01)
    wv2, bv2 = mkw(k2[7], (D2, D2), 0.05), mkw(k2[8], (D2,), 0.01)
    wo2, bo2 = mkw(k2[9], (D2, D2), 0.05), mkw(k2[10], (D2,), 0.01)
    mask2 = jax.random.bernoulli(k2[11], 0.3, (B2, SQ2, SK2))
    out2 = jax.block_until_ready(multi_headed_attention(
        key2, val2, qry2, wq=wq2, bq=bq2, wk=wk2, bk=bk2, wv=wv2, bv=bv2,
        wo=wo2, bo=bo2, head_count=H2, mask=mask2, tile_q=32, tile_kv=128))
    ref2 = _reference(key2, val2, qry2, wq2, bq2, wk2, bk2, wv2, bv2, wo2, bo2, H2,
                      mask=mask2)
    assert jnp.allclose(out2, ref2, atol=5e-3, rtol=5e-3), "f32 mismatch (kv-tiled)"

    # ---- bf16 end-to-end (bf16 MXU matmuls, f32 accumulation / softmax stats) ----
    bf = lambda t: t.astype(jnp.bfloat16)
    out_bf = jax.block_until_ready(multi_headed_attention(
        bf(key_in), bf(value_in), bf(query_in), wq=bf(wq), bq=bf(bq), wk=bf(wk),
        bk=bf(bk), wv=bf(wv), bv=bf(bv), wo=bf(wo), bo=bf(bo), head_count=H,
        mask=mask_full))
    ref_bf = _reference(bf(key_in), bf(value_in), bf(query_in), bf(wq), bf(bq),
                        bf(wk), bf(bk), bf(wv), bf(bv), bf(wo), bf(bo), H,
                        mask=mask_full)
    assert out_bf.dtype == jnp.bfloat16
    assert jnp.allclose(out_bf.astype(jnp.float32), ref_bf, atol=5e-2, rtol=5e-2), \
        "bf16 mismatch"

    print("KERNEL_OK")
</pallas_src>

<mosaic_0001>
module attributes {stable_mosaic.version = 11 : i64} {
  func.func @_proj_kernel(%arg0: i32, %arg1: memref<16x32xf32, #tpu.memory_space<vmem>>, %arg2: memref<32x32xf32, #tpu.memory_space<vmem>>, %arg3: memref<1x32xf32, #tpu.memory_space<vmem>>, %arg4: memref<16x32xf32, #tpu.memory_space<vmem>>) attributes {dimension_semantics = [#tpu.dimension_semantics<parallel>], iteration_bounds = array<i64: 2>, scalar_prefetch = 0 : i64, scratch_operands = 0 : i64, tpu.core_type = #tpu.core_type<tc>, window_params = [{transform_indices = @transform_0, window_bounds = array<i64: 16, 32>}, {pipeline_mode = #tpu.pipeline_mode<synchronous>, transform_indices = @transform_1, window_bounds = array<i64: 32, 32>}, {pipeline_mode = #tpu.pipeline_mode<synchronous>, transform_indices = @transform_2, window_bounds = array<i64: 1, 32>}, {transform_indices = @transform_3, window_bounds = array<i64: 16, 32>}]} {
    %c0 = arith.constant 0 : index
    %c0_0 = arith.constant 0 : index
    %0 = vector.load %arg1[%c0, %c0_0] : memref<16x32xf32, #tpu.memory_space<vmem>>, vector<16x32xf32>
    %c0_1 = arith.constant 0 : index
    %c0_2 = arith.constant 0 : index
    %1 = vector.load %arg2[%c0_1, %c0_2] : memref<32x32xf32, #tpu.memory_space<vmem>>, vector<32x32xf32>
    %cst = arith.constant dense<0.000000e+00> : vector<16x32xf32>
    %2 = tpu.matmul %0, %1, %cst {dimension_numbers = #tpu.dot_dimension_numbers<[1], [0], [0], [1], [0, 0, 1, 1], [], []>} : vector<16x32xf32>, vector<32x32xf32>, vector<16x32xf32> -> vector<16x32xf32>
    %c0_3 = arith.constant 0 : index
    %c0_4 = arith.constant 0 : index
    %3 = vector.load %arg3[%c0_3, %c0_4] : memref<1x32xf32, #tpu.memory_space<vmem>>, vector<1x32xf32>
    %4 = vector.broadcast %3 : vector<1x32xf32> to vector<16x32xf32>
    %5 = arith.addf %2, %4 : vector<16x32xf32>
    %c0_5 = arith.constant 0 : index
    %c0_6 = arith.constant 0 : index
    %6 = vector.load %arg4[%c0_5, %c0_6] : memref<16x32xf32, #tpu.memory_space<vmem>>, vector<16x32xf32>
    tpu.vector_store %arg4[%c0_5, %c0_6], %5 {strides = array<i32>} : memref<16x32xf32, #tpu.memory_space<vmem>>, vector<16x32xf32>,
    return
  }
  func.func @transform_0(%arg0: i32) -> (i32, i32) {
    %c0_i32 = arith.constant 0 : i32
    %c0_i32_0 = arith.constant 0 : i32
    return %arg0, %c0_i32 : i32, i32
  }
  func.func @transform_1(%arg0: i32) -> (i32, i32) {
    %c0_i32 = arith.constant 0 : i32
    %c0_i32_0 = arith.constant 0 : i32
    %c0_i32_1 = arith.constant 0 : i32
    return %c0_i32, %c0_i32_0 : i32, i32
  }
  func.func @transform_2(%arg0: i32) -> (i32, i32) {
    %c0_i32 = arith.constant 0 : i32
    %c0_i32_0 = arith.constant 0 : i32
    %c0_i32_1 = arith.constant 0 : i32
    return %c0_i32, %c0_i32_0 : i32, i32
  }
  func.func @transform_3(%arg0: i32) -> (i32, i32) {
    %c0_i32 = arith.constant 0 : i32
    %c0_i32_0 = arith.constant 0 : i32
    return %arg0, %c0_i32 : i32, i32
  }
}

</mosaic_0001>

<llo_original>
// kernel: tpu_custom_call.1
$region0: #{tpu_custom_call.1}
  #allocation0 [shape = 'u32[]', space=smem, size = 0x4, offset = 0x4, fixed_abs, tag = 'smem constant byte address 0x4 - core index']
  #allocation1 [shape = 'u32[144,128]{1,0:T(1,128)}', space=vmem, size = 0x12000, scoped, tag = 'internal scratch']
  %s0 = inlined_call_operand.hbm [shape: f32[32,32], index: 0, kind: input, shape index: {}]
  %s1 = inlined_call_operand.hbm [shape: f32[32,32], index: 1, kind: input, shape index: {}]
  %s2 = inlined_call_operand.vmem [shape: f32[1,32], index: 2, kind: input, shape index: {}]
  %s3 = inlined_call_operand.hbm [shape: f32[32,32], index: 3, kind: output, shape index: {}]
  %s4 = sld [smem:[#allocation0]]
  $region53: #{tpu_custom_call.1} parent=0
    _
  %s6 = ssub.s32 1, %s4
  %s7 = scalar_select 0, %s6, %s4
  $region1: #{tpu_custom_call.1} parent=0
    #allocation2 [shape = 'u8[16384]{0}', space=vmem, size = 0x4000, scoped, tag = 'input window, operand 0']
    #allocation3 [shape = 's32[2]{0}', space=sflag, size = 0x8, scoped, tag = 'scoped memory for tpu_custom_call.1']
    #allocation4 [shape = 's32[2]{0}', space=sflag, size = 0x8, scoped, tag = 'scoped memory for tpu_custom_call.1']
    #allocation5 [shape = 'u8[16384]{0}', space=vmem, size = 0x4000, scoped, tag = 'input window, operand 1, single buffered']
    #allocation6 [shape = 's32[1]{0}', space=sflag, size = 0x4, scoped, tag = 'scoped memory for tpu_custom_call.1']
    #allocation7 [shape = 'u8[16384]{0}', space=vmem, size = 0x4000, scoped, tag = 'output window, operand 0']
    %8 = vsyncpa [#allocation3], 0
    %s9 = scalar_lea.sflag [#allocation3], 1
    %10 = vsyncpa %s9, 0
    %11 = vsyncpa [#allocation6], 0
    %12 = vsyncpa [#allocation4], 0
    %s13 = scalar_lea.sflag [#allocation4], 1
    %14 = vsyncpa %s13, 0
    loop: start=0, step=1, limit=4
    $region2: #{tpu_custom_call.1} parent=1 // loop_pre_header
      _
    $region3: #{tpu_custom_call.1} parent=1 // loop_header
      %s16 = sphi 0, %s20
      %p17 = scmp.ge.s32.totalorder %s16, 4
      %s26 = sphi 0, %s28
      %s29 = sphi 0, %s26
      %s30 = sphi 0, %s29
      %s46 = sphi 0, %s30
      %s50 = sphi 0, %s50
      %s52 = sphi 0, %s50
      %s53 = sphi 0, %s52
      %s67 = sphi 0, %s53
      %s71 = sphi 0, %s71
      %s73 = sphi 0, %s71
      %s74 = sphi 0, %s73
      %s88 = sphi 0, %s74
      %s94 = sphi 0, %s96
      %s97 = sphi 0, %s94
      %s98 = sphi 0, %s97
      %s114 = sphi 0, %s98
    $region4: #{tpu_custom_call.1} parent=1 // loop_header_branch
      %19 = sbr.rel (%p17) target = $region8
    $region5: #{tpu_custom_call.1} parent=1 // loop_body
      %s21 = ssub.s32 %s16, 1
      %s22 = ssub.s32 %s16, 2
      %s23 = sadd.s32 %s16, 1
      %s24 = ssub.s32 %s16, %s23
      %p25 = scmp.eq.s32.totalorder %s24, 0
      %s27 = sadd.s32 %s26, 1
      %s28 = scalar_select %p25, %s26, %s27
      %p31 = pneg %p25
      %p32 = scmp.eq.s32.totalorder %s16, 1
      %p33 = por %p31, %p32
      %p34 = scmp.ne.s32.totalorder %s26, %s29
      %p35 = scmp.eq.s32.totalorder %s16, 0
      %p36 = por %p34, %p35
      %p37 = scmp.ne.s32.totalorder %s26, %s29
      %p38 = scmp.eq.s32.totalorder %s21, 1
      %p39 = por %p37, %p38
      %p40 = scmp.ne.s32.totalorder %s29, %s30
      %p41 = scmp.eq.s32.totalorder %s21, 0
      %p42 = por %p40, %p41
      %p43 = scmp.ne.s32.totalorder %s29, %s30
      %p44 = scmp.eq.s32.totalorder %s22, 1
      %p45 = por %p43, %p44
      %p47 = scmp.ne.s32.totalorder %s30, %s46
      %p48 = scmp.eq.s32.totalorder %s22, 0
      %p49 = por %p47, %p48
      %s51 = sadd.s32 %s50, 1
      %p54 = scmp.eq.s32.totalorder %s16, 1
      %p55 = scmp.ne.s32.totalorder %s50, %s52
      %p56 = scmp.eq.s32.totalorder %s16, 0
      %p57 = por %p55, %p56
      %p58 = scmp.ne.s32.totalorder %s50, %s52
      %p59 = scmp.eq.s32.totalorder %s21, 1
      %p60 = por %p58, %p59
      %p61 = scmp.ne.s32.totalorder %s52, %s53
      %p62 = scmp.eq.s32.totalorder %s21, 0
      %p63 = por %p61, %p62
      %p64 = scmp.ne.s32.totalorder %s52, %s53
      %p65 = scmp.eq.s32.totalorder %s22, 1
      %p66 = por %p64, %p65
      %p68 = scmp.ne.s32.totalorder %s53, %s67
      %p69 = scmp.eq.s32.totalorder %s22, 0
      %p70 = por %p68, %p69
      %s72 = sadd.s32 %s71, 1
      %p75 = scmp.eq.s32.totalorder %s16, 1
      %p76 = scmp.ne.s32.totalorder %s71, %s73
      %p77 = scmp.eq.s32.totalorder %s16, 0
      %p78 = por %p76, %p77
      %p79 = scmp.ne.s32.totalorder %s71, %s73
      %p80 = scmp.eq.s32.totalorder %s21, 1
      %p81 = por %p79, %p80
      %p82 = scmp.ne.s32.totalorder %s73, %s74
      %p83 = scmp.eq.s32.totalorder %s21, 0
      %p84 = por %p82, %p83
      %p85 = scmp.ne.s32.totalorder %s73, %s74
      %p86 = scmp.eq.s32.totalorder %s22, 1
      %p87 = por %p85, %p86
      %p89 = scmp.ne.s32.totalorder %s74, %s88
      %p90 = scmp.eq.s32.totalorder %s22, 0
      %p91 = por %p89, %p90
      %s92 = ssub.s32 %s16, %s23
      %p93 = scmp.eq.s32.totalorder %s92, 0
      %s95 = sadd.s32 %s94, 1
      %s96 = scalar_select %p93, %s94, %s95
      %p99 = pneg %p93
      %p100 = scmp.eq.s32.totalorder %s16, 1
      %p101 = por %p99, %p100
      %p102 = scmp.ne.s32.totalorder %s94, %s97
      %p103 = scmp.eq.s32.totalorder %s16, 0
      %p104 = por %p102, %p103
      %p105 = scmp.ne.s32.totalorder %s94, %s97
      %p106 = scmp.eq.s32.totalorder %s21, 1
      %p107 = por %p105, %p106
      %p108 = scmp.ne.s32.totalorder %s97, %s98
      %p109 = scmp.eq.s32.totalorder %s21, 0
      %p110 = por %p108, %p109
      %p111 = scmp.ne.s32.totalorder %s97, %s98
      %p112 = scmp.eq.s32.totalorder %s22, 1
      %p113 = por %p111, %p112
      %p115 = scmp.ne.s32.totalorder %s98, %s114
      %p116 = scmp.eq.s32.totalorder %s22, 0
      %p117 = por %p115, %p116
      %p118 = scmp.le.s32.totalorder 1, %s16
      %p119 = scmp.lt.s32.totalorder %s16, 3
      %p120 = pnand %p118, %p119
      %p121 = pneg %p120
      // Predicated region
      $region9: #{tpu_custom_call.1} parent=5 // pred_check
        _
      $region10: #{tpu_custom_call.1} parent=5 // pred_check_branch
        %123 = sbr.rel (%p120) target = $region12
      $region11: #{tpu_custom_call.1} parent=5 // pred_region
        %s124 = ssub.s32 %s16, 1
        // Predicated region
        $region13: #{tpu_custom_call.1} parent=11 // pred_check
          %p125 = pneg %p63
        $region14: #{tpu_custom_call.1} parent=11 // pred_check_branch
          %127 = sbr.rel (%p125) target = $region16
        $region15: #{tpu_custom_call.1} parent=11 // pred_region
          %s129 = ssub.s32 512, 512
          %130 = vsyncadd [#allocation6], %s129
          %s131 = sshll.u32 [#allocation5], 4
          %s132 = int_to_ptr.vmem [resolvable:$true] %s131
          %137 = dma.hbm_to_vmem [thread:$0]  %s1, 512, %s132, [#allocation6], 128, 128, 8
        $region16: #{tpu_custom_call.1} parent=11 // pred_fallthru
          _
        // Predicated region
        $region17: #{tpu_custom_call.1} parent=11 // pred_check
          %p138 = pneg %p84
        $region18: #{tpu_custom_call.1} parent=11 // pred_check_branch
          %140 = sbr.rel (%p138) target = $region20
        $region19: #{tpu_custom_call.1} parent=11 // pred_region
          _
        $region20: #{tpu_custom_call.1} parent=11 // pred_fallthru
          _
      $region12: #{tpu_custom_call.1} parent=5 // pred_fallthru
        _
      %p141 = scmp.lt.s32.totalorder %s16, 2
      // Predicated region
      $region21: #{tpu_custom_call.1} parent=5 // pred_check
        %p142 = pneg %p141
      $region22: #{tpu_custom_call.1} parent=5 // pred_check_branch
        %144 = sbr.rel (%p142) target = $region24
      $region23: #{tpu_custom_call.1} parent=5 // pred_region
        // Predicated region
        $region25: #{tpu_custom_call.1} parent=23 // pred_check
          %p145 = pneg %p36
        $region26: #{tpu_custom_call.1} parent=23 // pred_check_branch
          %147 = sbr.rel (%p145) target = $region28
        $region27: #{tpu_custom_call.1} parent=23 // pred_region
          %s148 = sand.u32 %s26, 1
          %s149 = scalar_lea.sflag [#allocation3], %s148
          %s150 = sand.u32 %s26, 1
          %s151 = smul.addr %s150, 16
          %s152 = scalar_lea.vmem [#allocation2], %s151
          %s153 = smul.u32 2, %s16
          %s155 = ssub.s32 256, 256
          %156 = vsyncadd %s149, %s155
          %s157 = smul.addr %s153, 128
          %s158 = scalar_lea.hbm %s0, %s157
          %s159 = sshll.u32 %s152, 4
          %s160 = int_to_ptr.vmem [resolvable:$true] %s159
          %165 = dma.hbm_to_vmem [thread:$0]  %s158, 256, %s160, %s149, 128, 128, 8
        $region28: #{tpu_custom_call.1} parent=23 // pred_fallthru
          _
      $region24: #{tpu_custom_call.1} parent=5 // pred_fallthru
        _
      %p166 = scmp.le.s32.totalorder 1, %s16
      %p167 = scmp.lt.s32.totalorder %s16, 3
      %p168 = pnand %p166, %p167
      %p169 = pneg %p168
      // Predicated region
      $region29: #{tpu_custom_call.1} parent=5 // pred_check
        _
      $region30: #{tpu_custom_call.1} parent=5 // pred_check_branch
        %171 = sbr.rel (%p168) target = $region32
      $region31: #{tpu_custom_call.1} parent=5 // pred_region
        %s172 = ssub.s32 %s16, 1
        %s173 = sand.u32 %s29, 1
        %s174 = scalar_lea.sflag [#allocation3], %s173
        %s175 = sand.u32 %s29, 1
        %s176 = smul.addr %s175, 16
        %s177 = scalar_lea.vmem [#allocation2], %s176
        // Predicated region
        $region33: #{tpu_custom_call.1} parent=31 // pred_check
          %p178 = pneg %p42
        $region34: #{tpu_custom_call.1} parent=31 // pred_check_branch
          %180 = sbr.rel (%p178) target = $region36
        $region35: #{tpu_custom_call.1} parent=31 // pred_region
          %181 = dma.done %s174, 256
        $region36: #{tpu_custom_call.1} parent=31 // pred_fallthru
          _
        // Predicated region
        $region37: #{tpu_custom_call.1} parent=31 // pred_check
          %p182 = pneg %p63
        $region38: #{tpu_custom_call.1} parent=31 // pred_check_branch
          %184 = sbr.rel (%p182) target = $region40
        $region39: #{tpu_custom_call.1} parent=31 // pred_region
          %185 = dma.done [#allocation6], 512
        $region40: #{tpu_custom_call.1} parent=31 // pred_fallthru
          _
        %s186 = sand.u32 %s29, 1
        %s187 = scalar_lea.sflag [#allocation3], %s186
        %s188 = sand.u32 %s29, 1
        %s189 = smul.addr %s188, 16
        %s190 = scalar_lea.vmem [#allocation2], %s189
        %p191 = pneg %p42
        %p192 = pneg %p39
        %p193 = pneg %p63
        %p194 = pneg %p60
        %p195 = pneg %p84
        %p196 = pneg %p81
        %p197 = pneg %p110
        %p198 = pneg %p107
        %s199 = sand.u32 %s97, 1
        %s200 = scalar_lea.sflag [#allocation4], %s199
        %s201 = sand.u32 %s97, 1
        %s202 = smul.addr %s201, 16
        %s203 = scalar_lea.vmem [#allocation7], %s202
        %s204 = smul.u32 2, %s21
        %s205 = smul.u32 2, %s21
        %v206 = vld [vmem:[%s177] sm:$0xff]
        %v207 = vld [vmem:[%s177 + $0x8] sm:$0xff]
        %v208 = vld [vmem:[#allocation5] sm:$0xff]
        %v209 = vld [vmem:[#allocation5 + $0x8] sm:$0xff]
        %v210 = vld [vmem:[#allocation5 + $0x10] sm:$0xff]
        %v211 = vld [vmem:[#allocation5 + $0x18] sm:$0xff]
        %v212 = vld [vmem:[%s2] sm:$0x1]
        %v214 = vlaneseq
        %v215 = vshrl.u32 %v214, 7
        %v216 = vsub.s32 0, %v215
        %v217 = vrot.slane %v212, %v216
        %vm219 = vcmask 261120
        %v221 = vsel %vm219, %v206, 0
        %v224 = vsel %vm219, %v207, 0
        %226 = vmatprep.subr.mxu0 0.0
        %227 = vmatpush1.msra.mxu0 %v208
        %228 = vmatprep.subr.mxu0 0.0
        %229 = vmatpush1.msra.mxu0 %v209
        %230 = vmatprep.subr.mxu0 0.0
        %231 = vmatpush1.msra.mxu0 %v210
        %232 = vmatprep.subr.mxu0 0.0
        %233 = vmatpush1.msra.mxu0 %v211
        %234 = vmatprep.subr.mxu0 0.0
        %235 = vmatpush1.msra.mxu0 0.0
        %236 = vmatprep.subr.mxu0 0.0
        %237 = vmatpush1.msra.mxu0 0.0
        %238 = vmatprep.subr.mxu0 0.0
        %239 = vmatpush1.msra.mxu0 0.0
        %240 = vmatprep.subr.mxu0 0.0
        %241 = vmatpush1.msra.mxu0 0.0
        %242 = vmatprep.subr.mxu0 0.0
        %243 = vmatpush1.msra.mxu0 0.0
        %244 = vmatprep.subr.mxu0 0.0
        %245 = vmatpush1.msra.mxu0 0.0
        %246 = vmatprep.subr.mxu0 0.0
        %247 = vmatpush1.msra.mxu0 0.0
        %248 = vmatprep.subr.mxu0 0.0
        %249 = vmatpush1.msra.mxu0 0.0
        %250 = vmatprep.subr.mxu0 0.0
        %251 = vmatpush1.msra.mxu0 0.0
        %252 = vmatprep.subr.mxu0 0.0
        %253 = vmatpush1.msra.mxu0 0.0
        %254 = vmatprep.subr.mxu0 0.0
        %255 = vmatpush1.msra.mxu0 0.0
        %256 = vmatprep.subr.mxu0 0.0
        %257 = vmatpush1.msra.mxu0 0.0
        %258 = vmatprep.subr.mxu0 0.0
        %259 = vmatpush1.msra.mxu0 0.0
        %260 = vmatprep.subr.mxu0 0.0
        %261 = vmatpush1.msra.mxu0 0.0
        %262 = vmatprep.subr.mxu0 0.0
        %263 = vmatpush1.msra.mxu0 0.0
        %264 = vmatprep.subr.mxu0 0.0
        %265 = vmatpush1.msra.mxu0 0.0
        %266 = vmatprep.subr.mxu0 0.0
        %267 = vmatpush1.msra.mxu0 0.0
        %268 = vmatprep.subr.mxu0 0.0
        %269 = vmatpush1.msra.mxu0 0.0
        %270 = vmatprep.subr.mxu0 0.0
        %271 = vmatpush1.msra.mxu0 0.0
        %272 = vmatprep.subr.mxu0 0.0
        %273 = vmatpush1.msra.mxu0 0.0
        %274 = vmatprep.subr.mxu0 0.0
        %275 = vmatpush1.msra.mxu0 0.0
        %276 = vmatprep.subr.mxu0 0.0
        %277 = vmatpush1.msra.mxu0 0.0
        %278 = vmatprep.subr.mxu0 0.0
        %279 = vmatpush1.msra.mxu0 0.0
        %280 = vmatprep.subr.mxu0 0.0
        %281 = vmatpush1.msra.mxu0 0.0
        %282 = vmatprep.subr.mxu0 0.0
        %283 = vmatpush1.msra.mxu0 0.0
        %284 = vmatprep.subr.mxu0 0.0
        %285 = vmatpush1.msra.mxu0 0.0
        %286 = vmatprep.subr.mxu0 0.0
        %287 = vmatpush1.msra.mxu0 0.0
        %288 = vmatprep.subr.mxu0 0.0
        %289 = vmatpush1.msra.mxu0 0.0
        %290 = vmatprep.mubr.f32.mxu0 0.0
        %291 = vmatmul.mubr.f32.gmra.mrb[0].mxu0 %v221
        %v292 = vpop.f32.mrb[0].mxu0
        %v293 = vadd.f32 %v217, %v292
        %v294 = vpop.f32.mrb[0].mxu0
        %295 = vmatprep.mubr.f32.mxu0 0.0
        %296 = vmatmul.mubr.f32.gmra.mrb[0].mxu0 %v224
        %v297 = vpop.f32.mrb[0].mxu0
        %v298 = vadd.f32 %v217, %v297
        %v299 = vpop.f32.mrb[0].mxu0
        %300 = vdwg.mxu0
        %301 = vst.msk [vmem:[%s203] sm:$0xff] %vm219, %v293
        %302 = vst.msk [vmem:[%s203 + $0x8] sm:$0xff] %vm219, %v298
        %s303 = sand.u32 %s97, 1
        %s304 = scalar_lea.sflag [#allocation4], %s303
        %s305 = sand.u32 %s97, 1
        %s306 = smul.addr %s305, 16
        %s307 = scalar_lea.vmem [#allocation7], %s306
        // Predicated region
        $region41: #{tpu_custom_call.1} parent=31 // pred_check
          %p308 = pneg %p107
        $region42: #{tpu_custom_call.1} parent=31 // pred_check_branch
          %310 = sbr.rel (%p308) target = $region44
        $region43: #{tpu_custom_call.1} parent=31 // pred_region
          %s311 = smul.u32 2, %s21
          %s313 = ssub.s32 256, 256
          %314 = vsyncadd %s304, %s313
          %s315 = smul.addr %s311, 128
          %s316 = scalar_lea.hbm %s3, %s315
          %s317 = sshll.u32 %s307, 4
          %s318 = int_to_ptr.vmem [resolvable:$true] %s317
          %323 = dma.vmem_to_hbm [thread:$0]  %s318, 256, %s316, %s304, 128, 128, 8
        $region44: #{tpu_custom_call.1} parent=31 // pred_fallthru
          _
      $region32: #{tpu_custom_call.1} parent=5 // pred_fallthru
        _
      %p324 = scmp.le.s32.totalorder 2, %s16
      // Predicated region
      $region45: #{tpu_custom_call.1} parent=5 // pred_check
        %p325 = pneg %p324
      $region46: #{tpu_custom_call.1} parent=5 // pred_check_branch
        %327 = sbr.rel (%p325) target = $region48
      $region47: #{tpu_custom_call.1} parent=5 // pred_region
        %s328 = ssub.s32 %s16, 2
        // Predicated region
        $region49: #{tpu_custom_call.1} parent=47 // pred_check
          %p329 = pneg %p113
        $region50: #{tpu_custom_call.1} parent=47 // pred_check_branch
          %331 = sbr.rel (%p329) target = $region52
        $region51: #{tpu_custom_call.1} parent=47 // pred_region
          %s332 = sand.u32 %s98, 1
          %s333 = scalar_lea.sflag [#allocation4], %s332
          %s334 = sand.u32 %s98, 1
          %s335 = smul.addr %s334, 16
          %s336 = scalar_lea.vmem [#allocation7], %s335
          %337 = dma.done %s333, 256
        $region52: #{tpu_custom_call.1} parent=47 // pred_fallthru
          _
      $region48: #{tpu_custom_call.1} parent=5 // pred_fallthru
        _
    $region6: #{tpu_custom_call.1} parent=1 // loop_footer
      %s20 = sadd.s32 1, %s16
    $region7: #{tpu_custom_call.1} parent=1 // loop_footer_branch
      %15 = sbr.rel target = $region3
    $region8: #{tpu_custom_call.1} parent=1 // loop_exit
      _
    %338 = vsyncpa [#allocation3], 1
    %s339 = scalar_lea.sflag [#allocation3], 1
    %340 = vsyncpa %s339, 1
    %341 = vsyncpa [#allocation6], 1
    %342 = vsyncpa [#allocation4], 1
    %s343 = scalar_lea.sflag [#allocation4], 1
    %344 = vsyncpa %s343, 1

</llo_original>
